<compile_context>
chip_gen: v7x
topology: tpu7x:2x2x1
jax: 0.10.0
libtpu: 0.0.40
codegen_flags: <defaults>
</compile_context>

<pallas_src>
import jax
import jax.numpy as jnp
from jax.experimental import pallas as pl
from jax.experimental.pallas import tpu as pltpu


def _round_up(x, m):
    return ((x + m - 1) // m) * m


def decoder_step_kernel(tok_ref, h0_ref, w_emb_ih_ref, w_hh_ref, b_rnn_ref,
                        w_fc_ref, b_fc_ref, pred_ref, hlast_ref, h_scr):
    """One RNN decode step per grid index t (recurrent over the grid).

    tok_ref     : (1, BP, 1)  int32 token ids for step t (padded rows hold 0)
    h0_ref      : (BP, HP)    initial hidden state (zero padded), read at t==0
    w_emb_ih_ref: (VP, HP)    bf16  fused  embedding @ W_ih   (zero padded)
    w_hh_ref    : (HP, HP)    bf16  W_hh                       (zero padded)
    b_rnn_ref   : (1, HP)     f32   b_ih + b_hh
    w_fc_ref    : (HP, VP)    bf16  output projection (pre-transposed)
    b_fc_ref    : (1, VP)     f32
    pred_ref    : (1, BP, VP) f32   logits for step t
    hlast_ref   : (BP, HP)    f32   hidden state after the last step
    h_scr       : (BP, HP)    f32   VMEM carry of the hidden state across steps
    """
    t = pl.program_id(0)

    @pl.when(t == 0)
    def _():
        h_scr[...] = h0_ref[...]

    bp, hp = h_scr.shape
    vp = w_emb_ih_ref.shape[0]

    # In-kernel "gather": one-hot over the (padded) vocab axis.  Because the
    # embedding table is pre-multiplied by W_ih, the first dot performs
    # gather + input-projection at once.  Padded batch rows use token 0; their
    # results are garbage but rows are independent and get sliced off outside.
    tok = tok_ref[0]                                              # (BP, 1) int32
    iota_v = jax.lax.broadcasted_iota(jnp.int32, (bp, vp), 1)     # (BP, VP)
    onehot = (iota_v == tok).astype(jnp.bfloat16)                 # (BP, VP) bf16

    h_prev = h_scr[...]                                           # (BP, HP) f32
    pre = (jnp.dot(onehot, w_emb_ih_ref[...],
                   preferred_element_type=jnp.float32)
           + jnp.dot(h_prev.astype(jnp.bfloat16), w_hh_ref[...],
                     preferred_element_type=jnp.float32)
           + b_rnn_ref[...])                                      # f32
    h_new = jnp.tanh(pre)                                         # f32

    h_scr[...] = h_new
    hlast_ref[...] = h_new                                        # VMEM-resident; HBM writeback once
    pred_ref[0] = (jnp.dot(h_new.astype(jnp.bfloat16), w_fc_ref[...],
                           preferred_element_type=jnp.float32)
                   + b_fc_ref[...])


def prepare_decoder_operands(params):
    """One-time weight prep: fold embedding@W_ih, fold the two RNN biases, pad
    to (8,128)-friendly shapes, and store matmul operands in bf16."""
    emb = params["embedding"]          # (V, E)
    w_ih = params["w_ih"]              # (E, H)
    w_hh = params["w_hh"]              # (H, H)
    w_fc = params["w_fc"]              # (H, V)

    V, _E = emb.shape
    H = w_hh.shape[0]
    VP = _round_up(V, 128)
    HP = _round_up(H, 128)

    fused_ih = (emb @ w_ih).astype(jnp.float32)                   # (V, H)

    w_emb_ih = jnp.zeros((VP, HP), jnp.bfloat16).at[:V, :H].set(
        fused_ih.astype(jnp.bfloat16))
    w_hh_p = jnp.zeros((HP, HP), jnp.bfloat16).at[:H, :H].set(
        w_hh.astype(jnp.bfloat16))
    b_rnn = jnp.zeros((1, HP), jnp.float32).at[:, :H].set(
        params["b_ih"] + params["b_hh"])
    w_fc_p = jnp.zeros((HP, VP), jnp.bfloat16).at[:H, :V].set(
        w_fc.astype(jnp.bfloat16))
    b_fc_p = jnp.zeros((1, VP), jnp.float32).at[:, :V].set(params["b_fc"])

    prepared = dict(w_emb_ih=w_emb_ih, w_hh=w_hh_p, b_rnn=b_rnn,
                    w_fc=w_fc_p, b_fc=b_fc_p)
    dims = dict(V=V, H=H, VP=VP, HP=HP)
    return prepared, dims


def decoder_decode(tokens, hidden, prepared, dims):
    """Fused T-step greedy-teacher-forced decode.

    tokens: (T, B) int32 token ids;  hidden: (1, B, H) f32.
    Returns (predictions (T, B, V), final hidden (1, B, H)).  Each step has
    exactly the semantics of the PyTorch module's forward (dropout_ratio=0).
    """
    T, B = tokens.shape
    V, H = dims["V"], dims["H"]
    VP, HP = dims["VP"], dims["HP"]
    BP = _round_up(max(B, 8), 8)

    # One-time padding of the dynamic operands for the whole decode.
    tok_p = jnp.zeros((T, BP, 1), jnp.int32).at[:, :B, 0].set(
        tokens.astype(jnp.int32))
    h0_p = jnp.zeros((BP, HP), jnp.float32).at[:B, :H].set(hidden[0])

    # Advisory cost on logical (unpadded) dims.
    E = H  # after the emb@W_ih fold the gather+proj is a B x V x H matmul
    flops = T * (2 * B * V * H + 2 * B * H * H + 2 * B * H * V)
    bytes_accessed = (
        2 * (prepared["w_emb_ih"].size + prepared["w_hh"].size
             + prepared["w_fc"].size)
        + 4 * (prepared["b_rnn"].size + prepared["b_fc"].size)
        + 4 * (tok_p.size + h0_p.size + T * B * V + B * H))

    preds_p, hlast_p = pl.pallas_call(
        decoder_step_kernel,
        out_shape=(
            jax.ShapeDtypeStruct((T, BP, VP), jnp.float32),
            jax.ShapeDtypeStruct((BP, HP), jnp.float32),
        ),
        grid=(T,),
        in_specs=[
            pl.BlockSpec((1, BP, 1), lambda t: (t, 0, 0)),    # tokens (per step)
            pl.BlockSpec((BP, HP), lambda t: (0, 0)),          # h0  (resident)
            pl.BlockSpec((VP, HP), lambda t: (0, 0)),          # emb@W_ih (resident)
            pl.BlockSpec((HP, HP), lambda t: (0, 0)),          # W_hh (resident)
            pl.BlockSpec((1, HP), lambda t: (0, 0)),           # b_ih+b_hh
            pl.BlockSpec((HP, VP), lambda t: (0, 0)),          # W_fc (resident)
            pl.BlockSpec((1, VP), lambda t: (0, 0)),           # b_fc
        ],
        out_specs=(
            pl.BlockSpec((1, BP, VP), lambda t: (t, 0, 0)),    # logits per step
            pl.BlockSpec((BP, HP), lambda t: (0, 0)),          # final hidden
        ),
        scratch_shapes=[pltpu.VMEM((BP, HP), jnp.float32)],    # hidden carry
        compiler_params=pltpu.CompilerParams(
            dimension_semantics=("arbitrary",)),               # recurrent axis
        cost_estimate=pl.CostEstimate(
            flops=flops,
            transcendentals=T * B * H,                          # tanh
            bytes_accessed=bytes_accessed),
    )(tok_p, h0_p, prepared["w_emb_ih"], prepared["w_hh"], prepared["b_rnn"],
      prepared["w_fc"], prepared["b_fc"])

    preds = preds_p[:, :B, :V]
    h_last = hlast_p[:B, :H]
    return preds, h_last[None]


def decoder_forward(input_tokens, hidden, prepared, dims):
    """Exact equivalent of the module forward: input (1, B), hidden (1, B, H)
    -> (prediction (B, V), hidden (1, B, H))."""
    preds, h_last = decoder_decode(input_tokens, hidden, prepared, dims)
    return preds[0], h_last


def init_params(key, output_dim, embed_dim, hid_dim):
    """Deterministic synthetic parameters (shapes mirror the PyTorch module);
    matmul weights stored pre-transposed (in_features, out_features)."""
    ks = jax.random.split(key, 7)
    scale = 0.1
    return {
        "embedding": scale * jax.random.normal(ks[0], (output_dim, embed_dim), jnp.float32),
        "w_ih": scale * jax.random.normal(ks[1], (embed_dim, hid_dim), jnp.float32),
        "b_ih": scale * jax.random.normal(ks[2], (1, hid_dim), jnp.float32),
        "w_hh": scale * jax.random.normal(ks[3], (hid_dim, hid_dim), jnp.float32),
        "b_hh": scale * jax.random.normal(ks[4], (1, hid_dim), jnp.float32),
        "w_fc": scale * jax.random.normal(ks[5], (hid_dim, output_dim), jnp.float32),
        "b_fc": scale * jax.random.normal(ks[6], (1, output_dim), jnp.float32),
    }


def reference_decode(tokens, hidden, params):
    """Pure-JAX f32 reference: the module forward applied step-by-step."""
    h = hidden[0]
    preds = []
    for t in range(tokens.shape[0]):
        emb = jnp.take(params["embedding"], tokens[t], axis=0)
        h = jnp.tanh(emb @ params["w_ih"] + params["b_ih"]
                     + h @ params["w_hh"] + params["b_hh"])
        preds.append(h @ params["w_fc"] + params["b_fc"])
    return jnp.stack(preds), h[None]


if __name__ == "__main__":
    # Shapes consistent with the module's forward:
    #   output_dim (vocab) V=32, dec_embed_dim E=16, dec_hid_dim H=32,
    #   batch B=4, decode length T=8 (module forward itself is one step).
    V, E, H, B, T = 32, 16, 32, 4, 8

    key = jax.random.PRNGKey(0)
    k_par, k_tok, k_hid = jax.random.split(key, 3)

    params = init_params(k_par, V, E, H)
    tokens = jax.random.randint(k_tok, (T, B), 0, V, dtype=jnp.int32)
    hidden = 0.1 * jax.random.normal(k_hid, (1, B, H), jnp.float32)  # (1, B, H)

    prepared, dims = prepare_decoder_operands(params)   # one-time weight prep

    # 1) Module-exact single step (seq_len == 1).
    pred1, h1 = decoder_forward(tokens[:1], hidden, prepared, dims)
    pred1 = jax.block_until_ready(pred1)
    h1 = jax.block_until_ready(h1)

    pred1_ref, h1_ref = reference_decode(tokens[:1], hidden, params)
    assert pred1.shape == (B, V) and h1.shape == (1, B, H)
    assert jnp.allclose(pred1, pred1_ref[0], atol=1e-2, rtol=1e-2)
    assert jnp.allclose(h1, h1_ref, atol=1e-2, rtol=1e-2)

    # 2) Fused T-step decode (one pallas_call, weights VMEM-resident, hidden
    #    carried in VMEM across grid steps).
    preds, h_last = decoder_decode(tokens, hidden, prepared, dims)
    preds = jax.block_until_ready(preds)
    h_last = jax.block_until_ready(h_last)

    preds_ref, h_last_ref = reference_decode(tokens, hidden, params)
    assert preds.shape == (T, B, V) and h_last.shape == (1, B, H)
    assert jnp.allclose(preds, preds_ref, atol=1e-2, rtol=1e-2)
    assert jnp.allclose(h_last, h_last_ref, atol=1e-2, rtol=1e-2)

    print("KERNEL_OK")
</pallas_src>

<mosaic_0001>
module attributes {stable_mosaic.version = 11 : i64} {
  func.func @decoder_step_kernel(%arg0: i32, %arg1: memref<1x8x1xi32, #tpu.memory_space<vmem>>, %arg2: memref<8x128xf32, #tpu.memory_space<vmem>>, %arg3: memref<128x128xbf16, #tpu.memory_space<vmem>>, %arg4: memref<128x128xbf16, #tpu.memory_space<vmem>>, %arg5: memref<1x128xf32, #tpu.memory_space<vmem>>, %arg6: memref<128x128xbf16, #tpu.memory_space<vmem>>, %arg7: memref<1x128xf32, #tpu.memory_space<vmem>>, %arg8: memref<1x8x128xf32, #tpu.memory_space<vmem>>, %arg9: memref<8x128xf32, #tpu.memory_space<vmem>>, %arg10: memref<8x128xf32, #tpu.memory_space<vmem>>) attributes {dimension_semantics = [#tpu.dimension_semantics<arbitrary>], iteration_bounds = array<i64: 1>, scalar_prefetch = 0 : i64, scratch_operands = 1 : i64, tpu.core_type = #tpu.core_type<tc>, window_params = [{transform_indices = @transform_0, window_bounds = array<i64: 1, 8, 1>}, {pipeline_mode = #tpu.pipeline_mode<synchronous>, transform_indices = @transform_1, window_bounds = array<i64: 8, 128>}, {pipeline_mode = #tpu.pipeline_mode<synchronous>, transform_indices = @transform_2, window_bounds = array<i64: 128, 128>}, {pipeline_mode = #tpu.pipeline_mode<synchronous>, transform_indices = @transform_3, window_bounds = array<i64: 128, 128>}, {pipeline_mode = #tpu.pipeline_mode<synchronous>, transform_indices = @transform_4, window_bounds = array<i64: 1, 128>}, {pipeline_mode = #tpu.pipeline_mode<synchronous>, transform_indices = @transform_5, window_bounds = array<i64: 128, 128>}, {pipeline_mode = #tpu.pipeline_mode<synchronous>, transform_indices = @transform_6, window_bounds = array<i64: 1, 128>}, {transform_indices = @transform_7, window_bounds = array<i64: 1, 8, 128>}, {pipeline_mode = #tpu.pipeline_mode<synchronous>, transform_indices = @transform_8, window_bounds = array<i64: 8, 128>}]} {
    %c0_i32 = arith.constant 0 : i32
    %0 = arith.cmpi eq, %arg0, %c0_i32 : i32
    %1 = arith.extui %0 : i1 to i32
    %c0_i32_0 = arith.constant 0 : i32
    %2 = arith.cmpi ne, %1, %c0_i32_0 : i32
    scf.if %2 {
      %c0_24 = arith.constant 0 : index
      %c0_25 = arith.constant 0 : index
      %33 = vector.load %arg2[%c0_24, %c0_25] : memref<8x128xf32, #tpu.memory_space<vmem>>, vector<8x128xf32>
      %c0_26 = arith.constant 0 : index
      %c0_27 = arith.constant 0 : index
      %34 = vector.load %arg10[%c0_26, %c0_27] : memref<8x128xf32, #tpu.memory_space<vmem>>, vector<8x128xf32>
      tpu.vector_store %arg10[%c0_26, %c0_27], %33 {strides = array<i32>} : memref<8x128xf32, #tpu.memory_space<vmem>>, vector<8x128xf32>,
    } else {
    }
    %c0 = arith.constant 0 : index
    %c0_1 = arith.constant 0 : index
    %c0_2 = arith.constant 0 : index
    %3 = vector.load %arg1[%c0, %c0_1, %c0_2] : memref<1x8x1xi32, #tpu.memory_space<vmem>>, vector<1x8x1xi32>
    %4 = vector.shape_cast %3 : vector<1x8x1xi32> to vector<8x1xi32>
    %5 = tpu.iota {dimensions = array<i32: 1>} : vector<8x128xi32>
    %6 = vector.broadcast %4 : vector<8x1xi32> to vector<8x128xi32>
    %7 = arith.cmpi eq, %5, %6 : vector<8x128xi32>
    %8 = arith.extui %7 : vector<8x128xi1> to vector<8x128xi32>
    %9 = arith.sitofp %8 : vector<8x128xi32> to vector<8x128xf32>
    %10 = arith.truncf %9 : vector<8x128xf32> to vector<8x128xbf16>
    %c0_3 = arith.constant 0 : index
    %c0_4 = arith.constant 0 : index
    %11 = vector.load %arg10[%c0_3, %c0_4] : memref<8x128xf32, #tpu.memory_space<vmem>>, vector<8x128xf32>
    %c0_5 = arith.constant 0 : index
    %c0_6 = arith.constant 0 : index
    %12 = vector.load %arg3[%c0_5, %c0_6] : memref<128x128xbf16, #tpu.memory_space<vmem>>, vector<128x128xbf16>
    %cst = arith.constant dense<0.000000e+00> : vector<8x128xf32>
    %13 = tpu.matmul %10, %12, %cst {dimension_numbers = #tpu.dot_dimension_numbers<[1], [0], [0], [1], [0, 0, 1, 1], [], []>} : vector<8x128xbf16>, vector<128x128xbf16>, vector<8x128xf32> -> vector<8x128xf32>
    %14 = arith.truncf %11 : vector<8x128xf32> to vector<8x128xbf16>
    %c0_7 = arith.constant 0 : index
    %c0_8 = arith.constant 0 : index
    %15 = vector.load %arg4[%c0_7, %c0_8] : memref<128x128xbf16, #tpu.memory_space<vmem>>, vector<128x128xbf16>
    %cst_9 = arith.constant dense<0.000000e+00> : vector<8x128xf32>
    %16 = tpu.matmul %14, %15, %cst_9 {dimension_numbers = #tpu.dot_dimension_numbers<[1], [0], [0], [1], [0, 0, 1, 1], [], []>} : vector<8x128xbf16>, vector<128x128xbf16>, vector<8x128xf32> -> vector<8x128xf32>
    %17 = arith.addf %13, %16 : vector<8x128xf32>
    %c0_10 = arith.constant 0 : index
    %c0_11 = arith.constant 0 : index
    %18 = vector.load %arg5[%c0_10, %c0_11] : memref<1x128xf32, #tpu.memory_space<vmem>>, vector<1x128xf32>
    %19 = vector.broadcast %18 : vector<1x128xf32> to vector<8x128xf32>
    %20 = arith.addf %17, %19 : vector<8x128xf32>
    %21 = math.tanh %20 : vector<8x128xf32>
    %c0_12 = arith.constant 0 : index
    %c0_13 = arith.constant 0 : index
    %22 = vector.load %arg10[%c0_12, %c0_13] : memref<8x128xf32, #tpu.memory_space<vmem>>, vector<8x128xf32>
    tpu.vector_store %arg10[%c0_12, %c0_13], %21 {strides = array<i32>} : memref<8x128xf32, #tpu.memory_space<vmem>>, vector<8x128xf32>,
    %c0_14 = arith.constant 0 : index
    %c0_15 = arith.constant 0 : index
    %23 = vector.load %arg9[%c0_14, %c0_15] : memref<8x128xf32, #tpu.memory_space<vmem>>, vector<8x128xf32>
    tpu.vector_store %arg9[%c0_14, %c0_15], %21 {strides = array<i32>} : memref<8x128xf32, #tpu.memory_space<vmem>>, vector<8x128xf32>,
    %24 = arith.truncf %21 : vector<8x128xf32> to vector<8x128xbf16>
    %c0_16 = arith.constant 0 : index
    %c0_17 = arith.constant 0 : index
    %25 = vector.load %arg6[%c0_16, %c0_17] : memref<128x128xbf16, #tpu.memory_space<vmem>>, vector<128x128xbf16>
    %cst_18 = arith.constant dense<0.000000e+00> : vector<8x128xf32>
    %26 = tpu.matmul %24, %25, %cst_18 {dimension_numbers = #tpu.dot_dimension_numbers<[1], [0], [0], [1], [0, 0, 1, 1], [], []>} : vector<8x128xbf16>, vector<128x128xbf16>, vector<8x128xf32> -> vector<8x128xf32>
    %c0_19 = arith.constant 0 : index
    %c0_20 = arith.constant 0 : index
    %27 = vector.load %arg7[%c0_19, %c0_20] : memref<1x128xf32, #tpu.memory_space<vmem>>, vector<1x128xf32>
    %28 = vector.broadcast %27 : vector<1x128xf32> to vector<8x128xf32>
    %29 = arith.addf %26, %28 : vector<8x128xf32>
    %c0_21 = arith.constant 0 : index
    %c0_22 = arith.constant 0 : index
    %c0_23 = arith.constant 0 : index
    %30 = vector.load %arg8[%c0_21, %c0_22, %c0_23] : memref<1x8x128xf32, #tpu.memory_space<vmem>>, vector<1x8x128xf32>
    %31 = vector.shape_cast %30 : vector<1x8x128xf32> to vector<8x128xf32>
    %32 = vector.shape_cast %29 : vector<8x128xf32> to vector<1x8x128xf32>
    tpu.vector_store %arg8[%c0_21, %c0_22, %c0_23], %32 {strides = array<i32>} : memref<1x8x128xf32, #tpu.memory_space<vmem>>, vector<1x8x128xf32>,
    return
  }
  func.func @transform_0(%arg0: i32) -> (i32, i32, i32) {
    %c0_i32 = arith.constant 0 : i32
    %c0_i32_0 = arith.constant 0 : i32
    %c0_i32_1 = arith.constant 0 : i32
    return %arg0, %c0_i32, %c0_i32_0 : i32, i32, i32
  }
  func.func @transform_1(%arg0: i32) -> (i32, i32) {
    %c0_i32 = arith.constant 0 : i32
    %c0_i32_0 = arith.constant 0 : i32
    %c0_i32_1 = arith.constant 0 : i32
    return %c0_i32, %c0_i32_0 : i32, i32
  }
  func.func @transform_2(%arg0: i32) -> (i32, i32) {
    %c0_i32 = arith.constant 0 : i32
    %c0_i32_0 = arith.constant 0 : i32
    %c0_i32_1 = arith.constant 0 : i32
    return %c0_i32, %c0_i32_0 : i32, i32
  }
  func.func @transform_3(%arg0: i32) -> (i32, i32) {
    %c0_i32 = arith.constant 0 : i32
    %c0_i32_0 = arith.constant 0 : i32
    %c0_i32_1 = arith.constant 0 : i32
    return %c0_i32, %c0_i32_0 : i32, i32
  }
  func.func @transform_4(%arg0: i32) -> (i32, i32) {
    %c0_i32 = arith.constant 0 : i32
    %c0_i32_0 = arith.constant 0 : i32
    %c0_i32_1 = arith.constant 0 : i32
    return %c0_i32, %c0_i32_0 : i32, i32
  }
  func.func @transform_5(%arg0: i32) -> (i32, i32) {
    %c0_i32 = arith.constant 0 : i32
    %c0_i32_0 = arith.constant 0 : i32
    %c0_i32_1 = arith.constant 0 : i32
    return %c0_i32, %c0_i32_0 : i32, i32
  }
  func.func @transform_6(%arg0: i32) -> (i32, i32) {
    %c0_i32 = arith.constant 0 : i32
    %c0_i32_0 = arith.constant 0 : i32
    %c0_i32_1 = arith.constant 0 : i32
    return %c0_i32, %c0_i32_0 : i32, i32
  }
  func.func @transform_7(%arg0: i32) -> (i32, i32, i32) {
    %c0_i32 = arith.constant 0 : i32
    %c0_i32_0 = arith.constant 0 : i32
    %c0_i32_1 = arith.constant 0 : i32
    return %arg0, %c0_i32, %c0_i32_0 : i32, i32, i32
  }
  func.func @transform_8(%arg0: i32) -> (i32, i32) {
    %c0_i32 = arith.constant 0 : i32
    %c0_i32_0 = arith.constant 0 : i32
    %c0_i32_1 = arith.constant 0 : i32
    return %c0_i32, %c0_i32_0 : i32, i32
  }
}

</mosaic_0001>

<llo_original>
// kernel: tpu_custom_call.1
$region0: #{tpu_custom_call.1}
  #allocation0 [shape = 'u32[]', space=smem, size = 0x4, offset = 0x4, fixed_abs, tag = 'smem constant byte address 0x4 - core index']
  #allocation1 [shape = 'u32[144,128]{1,0:T(1,128)}', space=vmem, size = 0x12000, scoped, tag = 'internal scratch']
  #allocation2 [shape = 'f32[8,128]{1,0:T(8,128)}', space=vmem, size = 0x1000, scoped, tag = 'scratch operand']
  %s0 = inlined_call_operand.vmem [shape: s32[1,8,1], index: 0, kind: input, shape index: {}]
  %s1 = inlined_call_operand.vmem [shape: f32[8,128], index: 1, kind: input, shape index: {}]
  %s2 = inlined_call_operand.hbm [shape: bf16[128,128], index: 2, kind: input, shape index: {}]
  %s3 = inlined_call_operand.hbm [shape: bf16[128,128], index: 3, kind: input, shape index: {}]
  %s4 = inlined_call_operand.vmem [shape: f32[1,128], index: 4, kind: input, shape index: {}]
  %s5 = inlined_call_operand.hbm [shape: bf16[128,128], index: 5, kind: input, shape index: {}]
  %s6 = inlined_call_operand.vmem [shape: f32[1,128], index: 6, kind: input, shape index: {}]
  %s7 = inlined_call_operand.hbm [shape: f32[1,8,128], index: 7, kind: output, shape index: {0}]
  %s8 = inlined_call_operand.hbm [shape: f32[8,128], index: 8, kind: output, shape index: {1}]
  %9 = xla_tuple %s7, %s8
  %s10 = sld [smem:[#allocation0]]
  $region62: #{tpu_custom_call.1} parent=0
    _
  %s12 = ssub.s32 1, %s10
  %s13 = scalar_select 0, %s12, %s10
  $region1: #{tpu_custom_call.1} parent=0
    #allocation3 [shape = 'u8[32768]{0}', space=vmem, size = 0x8000, scoped, tag = 'input window, operand 2, single buffered']
    #allocation4 [shape = 's32[1]{0}', space=sflag, size = 0x4, scoped, tag = 'scoped memory for tpu_custom_call.1']
    #allocation5 [shape = 's32[1]{0}', space=sflag, size = 0x4, scoped, tag = 'scoped memory for tpu_custom_call.1']
    #allocation6 [shape = 'u8[32768]{0}', space=vmem, size = 0x8000, scoped, tag = 'input window, operand 3, single buffered']
    #allocation7 [shape = 's32[1]{0}', space=sflag, size = 0x4, scoped, tag = 'scoped memory for tpu_custom_call.1']
    #allocation8 [shape = 'u8[32768]{0}', space=vmem, size = 0x8000, scoped, tag = 'input window, operand 5, single buffered']
    #allocation9 [shape = 'u8[4096]{0}', space=vmem, size = 0x1000, scoped, tag = 'output window, operand 0, single buffered']
    #allocation10 [shape = 'u8[4096]{0}', space=vmem, size = 0x1000, scoped, tag = 'output window, operand 1, single buffered']
    #allocation11 [shape = 's32[1]{0}', space=sflag, size = 0x4, scoped, tag = 'scoped memory for tpu_custom_call.1']
    %14 = vsyncpa [#allocation4], 0
    %15 = vsyncpa [#allocation7], 0
    %16 = vsyncpa [#allocation5], 0
    %17 = vsyncpa [#allocation11], 0
    // Predicated region
    $region2: #{tpu_custom_call.1} parent=1 // pred_check
      _
    $region3: #{tpu_custom_call.1} parent=1 // pred_check_branch
      %19 = sbr.rel (0) target = $region5
    $region4: #{tpu_custom_call.1} parent=1 // pred_region
      _
    $region5: #{tpu_custom_call.1} parent=1 // pred_fallthru
      _
    // Predicated region
    $region6: #{tpu_custom_call.1} parent=1 // pred_check
      _
    $region7: #{tpu_custom_call.1} parent=1 // pred_check_branch
      %21 = sbr.rel (0) target = $region9
    $region8: #{tpu_custom_call.1} parent=1 // pred_region
      _
    $region9: #{tpu_custom_call.1} parent=1 // pred_fallthru
      _
    // Predicated region
    $region10: #{tpu_custom_call.1} parent=1 // pred_check
      _
    $region11: #{tpu_custom_call.1} parent=1 // pred_check_branch
      %23 = sbr.rel (0) target = $region13
    $region12: #{tpu_custom_call.1} parent=1 // pred_region
      %s25 = ssub.s32 1024, 1024
      %26 = vsyncadd [#allocation4], %s25
      %s27 = sshll.u32 [#allocation3], 4
      %s28 = int_to_ptr.vmem [resolvable:$true] %s27
      %33 = dma.hbm_to_vmem [thread:$0]  %s2, 1024, %s28, [#allocation4], 64, 64, 4
    $region13: #{tpu_custom_call.1} parent=1 // pred_fallthru
      _
    // Predicated region
    $region14: #{tpu_custom_call.1} parent=1 // pred_check
      _
    $region15: #{tpu_custom_call.1} parent=1 // pred_check_branch
      %35 = sbr.rel (0) target = $region17
    $region16: #{tpu_custom_call.1} parent=1 // pred_region
      %s37 = ssub.s32 1024, 1024
      %38 = vsyncadd [#allocation7], %s37
      %s39 = sshll.u32 [#allocation6], 4
      %s40 = int_to_ptr.vmem [resolvable:$true] %s39
      %45 = dma.hbm_to_vmem [thread:$0]  %s3, 1024, %s40, [#allocation7], 64, 64, 4
    $region17: #{tpu_custom_call.1} parent=1 // pred_fallthru
      _
    // Predicated region
    $region18: #{tpu_custom_call.1} parent=1 // pred_check
      _
    $region19: #{tpu_custom_call.1} parent=1 // pred_check_branch
      %47 = sbr.rel (0) target = $region21
    $region20: #{tpu_custom_call.1} parent=1 // pred_region
      _
    $region21: #{tpu_custom_call.1} parent=1 // pred_fallthru
      _
    // Predicated region
    $region22: #{tpu_custom_call.1} parent=1 // pred_check
      _
    $region23: #{tpu_custom_call.1} parent=1 // pred_check_branch
      %49 = sbr.rel (0) target = $region25
    $region24: #{tpu_custom_call.1} parent=1 // pred_region
      %s51 = ssub.s32 1024, 1024
      %52 = vsyncadd [#allocation7], %s51
      %s53 = sshll.u32 [#allocation8], 4
      %s54 = int_to_ptr.vmem [resolvable:$true] %s53
      %59 = dma.hbm_to_vmem [thread:$0]  %s5, 1024, %s54, [#allocation7], 64, 64, 4
    $region25: #{tpu_custom_call.1} parent=1 // pred_fallthru
      _
    // Predicated region
    $region26: #{tpu_custom_call.1} parent=1 // pred_check
      _
    $region27: #{tpu_custom_call.1} parent=1 // pred_check_branch
      %61 = sbr.rel (0) target = $region29
    $region28: #{tpu_custom_call.1} parent=1 // pred_region
      _
    $region29: #{tpu_custom_call.1} parent=1 // pred_fallthru
      _
    // Predicated region
    $region30: #{tpu_custom_call.1} parent=1 // pred_check
      _
    $region31: #{tpu_custom_call.1} parent=1 // pred_check_branch
      %63 = sbr.rel (0) target = $region33
    $region32: #{tpu_custom_call.1} parent=1 // pred_region
      %64 = dma.done [#allocation4], 1024
    $region33: #{tpu_custom_call.1} parent=1 // pred_fallthru
      _
    // Predicated region
    $region34: #{tpu_custom_call.1} parent=1 // pred_check
      _
    $region35: #{tpu_custom_call.1} parent=1 // pred_check_branch
      %66 = sbr.rel (0) target = $region37
    $region36: #{tpu_custom_call.1} parent=1 // pred_region
      %67 = dma.done [#allocation7], 1024
    $region37: #{tpu_custom_call.1} parent=1 // pred_fallthru
      _
    // Predicated region
    $region38: #{tpu_custom_call.1} parent=1 // pred_check
      _
    $region39: #{tpu_custom_call.1} parent=1 // pred_check_branch
      %69 = sbr.rel (0) target = $region41
    $region40: #{tpu_custom_call.1} parent=1 // pred_region
      %70 = dma.done [#allocation7], 1024
    $region41: #{tpu_custom_call.1} parent=1 // pred_fallthru
      _
    %p72 = scmp.eq.s32.totalorder 0, 0
    // Predicated region
    $region42: #{tpu_custom_call.1} parent=1 // pred_check
      %p73 = pneg %p72
    $region43: #{tpu_custom_call.1} parent=1 // pred_check_branch
      %75 = sbr.rel (%p73) target = $region45
    $region44: #{tpu_custom_call.1} parent=1 // pred_region
      %v76 = vld [vmem:[%s1] sm:$0xff]
      %77 = vst [vmem:[#allocation2] sm:$0xff] %v76
    $region45: #{tpu_custom_call.1} parent=1 // pred_fallthru
      _
    %v78 = vld [vmem:[%s0] sm:$0xff]
    %v79 = vlaneseq
    %v80 = vand.u32 %v79, 127
    %81 = vset.pattern.permute.xlu0 0
    %82 = vperm.xlu0 %81, %v78
    %v83 = vpop.permute.xlu0 %82
    %vm84 = vcmp.eq.s32.totalorder %v80, %v83
    %v85 = vsel %vm84, 1, 0
    %v86 = vcvt.s32.f32 %v85
    %v87 = vpack.c.bf16 %v86, %v86
    %v88 = vld [vmem:[#allocation2] sm:$0xff]
    %v89 = vld [vmem:[#allocation3] sm:$0xf]
    %v90 = vld [vmem:[#allocation3 + $0x4] sm:$0xf]
    %v91 = vld [vmem:[#allocation3 + $0x8] sm:$0xf]
    %v92 = vld [vmem:[#allocation3 + $0xc] sm:$0xf]
    %v93 = vld [vmem:[#allocation3 + $0x10] sm:$0xf]
    %v94 = vld [vmem:[#allocation3 + $0x14] sm:$0xf]
    %v95 = vld [vmem:[#allocation3 + $0x18] sm:$0xf]
    %v96 = vld [vmem:[#allocation3 + $0x1c] sm:$0xf]
    %v97 = vld [vmem:[#allocation3 + $0x20] sm:$0xf]
    %v98 = vld [vmem:[#allocation3 + $0x24] sm:$0xf]
    %v99 = vld [vmem:[#allocation3 + $0x28] sm:$0xf]
    %v100 = vld [vmem:[#allocation3 + $0x2c] sm:$0xf]
    %v101 = vld [vmem:[#allocation3 + $0x30] sm:$0xf]
    %v102 = vld [vmem:[#allocation3 + $0x34] sm:$0xf]
    %v103 = vld [vmem:[#allocation3 + $0x38] sm:$0xf]
    %v104 = vld [vmem:[#allocation3 + $0x3c] sm:$0xf]
    %v105 = vpack.c.bf16 %v88, %v88
    %v106 = vld [vmem:[#allocation6] sm:$0xf]
    %v107 = vld [vmem:[#allocation6 + $0x4] sm:$0xf]
    %v108 = vld [vmem:[#allocation6 + $0x8] sm:$0xf]
    %v109 = vld [vmem:[#allocation6 + $0xc] sm:$0xf]
    %v110 = vld [vmem:[#allocation6 + $0x10] sm:$0xf]
    %v111 = vld [vmem:[#allocation6 + $0x14] sm:$0xf]
    %v112 = vld [vmem:[#allocation6 + $0x18] sm:$0xf]
    %v113 = vld [vmem:[#allocation6 + $0x1c] sm:$0xf]
    %v114 = vld [vmem:[#allocation6 + $0x20] sm:$0xf]
    %v115 = vld [vmem:[#allocation6 + $0x24] sm:$0xf]
    %v116 = vld [vmem:[#allocation6 + $0x28] sm:$0xf]
    %v117 = vld [vmem:[#allocation6 + $0x2c] sm:$0xf]
    %v118 = vld [vmem:[#allocation6 + $0x30] sm:$0xf]
    %v119 = vld [vmem:[#allocation6 + $0x34] sm:$0xf]
    %v120 = vld [vmem:[#allocation6 + $0x38] sm:$0xf]
    %v121 = vld [vmem:[#allocation6 + $0x3c] sm:$0xf]
    %v138 = vunpack.c.l.b16 %v106
    %v139 = vunpack.c.l.b16 %v107
    %v140 = vunpack.c.l.b16 %v108
    %v141 = vunpack.c.l.b16 %v109
    %v142 = vunpack.c.l.b16 %v110
    %v143 = vunpack.c.l.b16 %v111
    %v144 = vunpack.c.l.b16 %v112
    %v145 = vunpack.c.l.b16 %v113
    %v146 = vunpack.c.l.b16 %v114
    %v147 = vunpack.c.l.b16 %v115
    %v148 = vunpack.c.l.b16 %v116
    %v149 = vunpack.c.l.b16 %v117
    %v150 = vunpack.c.l.b16 %v118
    %v151 = vunpack.c.l.b16 %v119
    %v152 = vunpack.c.l.b16 %v120
    %v153 = vunpack.c.l.b16 %v121
    %v154 = vpack.c.b16 %v139, %v138
    %v155 = vpack.c.b16 %v141, %v140
    %v156 = vpack.c.b16 %v143, %v142
    %v157 = vpack.c.b16 %v145, %v144
    %v158 = vpack.c.b16 %v147, %v146
    %v159 = vpack.c.b16 %v149, %v148
    %v160 = vpack.c.b16 %v151, %v150
    %v161 = vpack.c.b16 %v153, %v152
    %170 = vmatprep.subr.bf16.mxu0 0
    %171 = vmatpush1.bf16.msra.mxu0 %v154
    %172 = vmatprep.subr.bf16.mxu0 0
    %173 = vmatpush1.bf16.msra.mxu0 %v155
    %174 = vmatprep.subr.bf16.mxu0 0
    %175 = vmatpush1.bf16.msra.mxu0 %v156
    %176 = vmatprep.subr.bf16.mxu0 0
    %177 = vmatpush1.bf16.msra.mxu0 %v157
    %178 = vmatprep.subr.bf16.mxu0 0
    %179 = vmatpush1.bf16.msra.mxu0 %v158
    %180 = vmatprep.subr.bf16.mxu0 0
    %181 = vmatpush1.bf16.msra.mxu0 %v159
    %182 = vmatprep.subr.bf16.mxu0 0
    %183 = vmatpush1.bf16.msra.mxu0 %v160
    %184 = vmatprep.subr.bf16.mxu0 0
    %185 = vmatpush1.bf16.msra.mxu0 %v161
    %186 = vmatprep.subr.bf16.mxu0 0
    %187 = vmatpush1.bf16.msra.mxu0 0
    %188 = vmatprep.subr.bf16.mxu0 0
    %189 = vmatpush1.bf16.msra.mxu0 0
    %190 = vmatprep.subr.bf16.mxu0 0
    %191 = vmatpush1.bf16.msra.mxu0 0
    %192 = vmatprep.subr.bf16.mxu0 0
    %193 = vmatpush1.bf16.msra.mxu0 0
    %194 = vmatprep.subr.bf16.mxu0 0
    %195 = vmatpush1.bf16.msra.mxu0 0
    %196 = vmatprep.subr.bf16.mxu0 0
    %197 = vmatpush1.bf16.msra.mxu0 0
    %198 = vmatprep.subr.bf16.mxu0 0
    %199 = vmatpush1.bf16.msra.mxu0 0
    %200 = vmatprep.subr.bf16.mxu0 0
    %201 = vmatpush1.bf16.msra.mxu0 0
    %202 = vmatprep.mubr.bf16.mxu0 0
    %203 = vmatmul.mubr.bf16.gmra.mrb[0].mxu0 %v105
    %v204 = vpop.f32.mrb[0].mxu0
    %v205 = vadd.f32 0.0, %v204
    %v206 = vpop.f32.mrb[0].mxu0
    %v207 = vpop.f32.mrb[0].mxu0
    %v208 = vpop.f32.mrb[0].mxu0
    %209 = vdwg.mxu0
    %v226 = vunpack.c.l.b16 %v89
    %v227 = vunpack.c.l.b16 %v90
    %v228 = vunpack.c.l.b16 %v91
    %v229 = vunpack.c.l.b16 %v92
    %v230 = vunpack.c.l.b16 %v93
    %v231 = vunpack.c.l.b16 %v94
    %v232 = vunpack.c.l.b16 %v95
    %v233 = vunpack.c.l.b16 %v96
    %v234 = vunpack.c.l.b16 %v97
    %v235 = vunpack.c.l.b16 %v98
    %v236 = vunpack.c.l.b16 %v99
    %v237 = vunpack.c.l.b16 %v100
    %v238 = vunpack.c.l.b16 %v101
    %v239 = vunpack.c.l.b16 %v102
    %v240 = vunpack.c.l.b16 %v103
    %v241 = vunpack.c.l.b16 %v104
    %v242 = vpack.c.b16 %v227, %v226
    %v243 = vpack.c.b16 %v229, %v228
    %v244 = vpack.c.b16 %v231, %v230
    %v245 = vpack.c.b16 %v233, %v232
    %v246 = vpack.c.b16 %v235, %v234
    %v247 = vpack.c.b16 %v237, %v236
    %v248 = vpack.c.b16 %v239, %v238
    %v249 = vpack.c.b16 %v241, %v240
    %258 = vmatprep.subr.bf16.mxu0 0
    %259 = vmatpush1.bf16.msra.mxu0 %v242
    %260 = vmatprep.subr.bf16.mxu0 0
    %261 = vmatpush1.bf16.msra.mxu0 %v243
    %262 = vmatprep.subr.bf16.mxu0 0
    %263 = vmatpush1.bf16.msra.mxu0 %v244
    %264 = vmatprep.subr.bf16.mxu0 0
    %265 = vmatpush1.bf16.msra.mxu0 %v245
    %266 = vmatprep.subr.bf16.mxu0 0
    %267 = vmatpush1.bf16.msra.mxu0 %v246
    %268 = vmatprep.subr.bf16.mxu0 0
    %269 = vmatpush1.bf16.msra.mxu0 %v247
    %270 = vmatprep.subr.bf16.mxu0 0
    %271 = vmatpush1.bf16.msra.mxu0 %v248
    %272 = vmatprep.subr.bf16.mxu0 0
    %273 = vmatpush1.bf16.msra.mxu0 %v249
    %274 = vmatprep.subr.bf16.mxu0 0
    %275 = vmatpush1.bf16.msra.mxu0 0
    %276 = vmatprep.subr.bf16.mxu0 0
    %277 = vmatpush1.bf16.msra.mxu0 0
    %278 = vmatprep.subr.bf16.mxu0 0
    %279 = vmatpush1.bf16.msra.mxu0 0
    %280 = vmatprep.subr.bf16.mxu0 0
    %281 = vmatpush1.bf16.msra.mxu0 0
    %282 = vmatprep.subr.bf16.mxu0 0
    %283 = vmatpush1.bf16.msra.mxu0 0
    %284 = vmatprep.subr.bf16.mxu0 0
    %285 = vmatpush1.bf16.msra.mxu0 0
    %286 = vmatprep.subr.bf16.mxu0 0
    %287 = vmatpush1.bf16.msra.mxu0 0
    %288 = vmatprep.subr.bf16.mxu0 0
    %289 = vmatpush1.bf16.msra.mxu0 0
    %290 = vmatprep.mubr.bf16.mxu0 0
    %291 = vmatmul.mubr.bf16.gmra.mrb[0].mxu0 %v87
    %v292 = vpop.f32.mrb[0].mxu0
    %v293 = vadd.f32 %v205, %v292
    %v294 = vpop.f32.mrb[0].mxu0
    %v295 = vpop.f32.mrb[0].mxu0
    %v296 = vpop.f32.mrb[0].mxu0
    %297 = vdwg.mxu0
    %v298 = vld [vmem:[%s4] sm:$0x1]
    %v300 = vlaneseq
    %v301 = vshrl.u32 %v300, 7
    %v302 = vsub.s32 0, %v301
    %v303 = vrot.slane %v298, %v302
    %v305 = vadd.f32 %v293, %v303
    %v306 = vtanh.pop %v305
    %307 = vst [vmem:[#allocation2] sm:$0xff] %v306
    %308 = vst [vmem:[#allocation10] sm:$0xff] %v306
    %v309 = vpack.c.bf16 %v306, %v306
    %v310 = vld [vmem:[#allocation8] sm:$0xf]
    %v311 = vld [vmem:[#allocation8 + $0x4] sm:$0xf]
    %v312 = vld [vmem:[#allocation8 + $0x8] sm:$0xf]
    %v313 = vld [vmem:[#allocation8 + $0xc] sm:$0xf]
    %v314 = vld [vmem:[#allocation8 + $0x10] sm:$0xf]
    %v315 = vld [vmem:[#allocation8 + $0x14] sm:$0xf]
    %v316 = vld [vmem:[#allocation8 + $0x18] sm:$0xf]
    %v317 = vld [vmem:[#allocation8 + $0x1c] sm:$0xf]
    %v318 = vld [vmem:[#allocation8 + $0x20] sm:$0xf]
    %v319 = vld [vmem:[#allocation8 + $0x24] sm:$0xf]
    %v320 = vld [vmem:[#allocation8 + $0x28] sm:$0xf]
    %v321 = vld [vmem:[#allocation8 + $0x2c] sm:$0xf]
    %v322 = vld [vmem:[#allocation8 + $0x30] sm:$0xf]
    %v323 = vld [vmem:[#allocation8 + $0x34] sm:$0xf]
    %v324 = vld [vmem:[#allocation8 + $0x38] sm:$0xf]
    %v325 = vld [vmem:[#allocation8 + $0x3c] sm:$0xf]
    %v326 = vld [vmem:[%s6] sm:$0x1]
    %v328 = vlaneseq
    %v329 = vshrl.u32 %v328, 7
    %v330 = vsub.s32 0, %v329
    %v331 = vrot.slane %v326, %v330
    %v349 = vunpack.c.l.b16 %v310
    %v350 = vunpack.c.l.b16 %v311
    %v351 = vunpack.c.l.b16 %v312
    %v352 = vunpack.c.l.b16 %v313
    %v353 = vunpack.c.l.b16 %v314
    %v354 = vunpack.c.l.b16 %v315
    %v355 = vunpack.c.l.b16 %v316
    %v356 = vunpack.c.l.b16 %v317
    %v357 = vunpack.c.l.b16 %v318
    %v358 = vunpack.c.l.b16 %v319
    %v359 = vunpack.c.l.b16 %v320
    %v360 = vunpack.c.l.b16 %v321
    %v361 = vunpack.c.l.b16 %v322
    %v362 = vunpack.c.l.b16 %v323
    %v363 = vunpack.c.l.b16 %v324
    %v364 = vunpack.c.l.b16 %v325
    %v365 = vpack.c.b16 %v350, %v349
    %v366 = vpack.c.b16 %v352, %v351
    %v367 = vpack.c.b16 %v354, %v353
    %v368 = vpack.c.b16 %v356, %v355
    %v369 = vpack.c.b16 %v358, %v357
    %v370 = vpack.c.b16 %v360, %v359
    %v371 = vpack.c.b16 %v362, %v361
    %v372 = vpack.c.b16 %v364, %v363
    %381 = vmatprep.subr.bf16.mxu0 0
    %382 = vmatpush1.bf16.msra.mxu0 %v365
    %383 = vmatprep.subr.bf16.mxu0 0
    %384 = vmatpush1.bf16.msra.mxu0 %v366
    %385 = vmatprep.subr.bf16.mxu0 0
    %386 = vmatpush1.bf16.msra.mxu0 %v367
    %387 = vmatprep.subr.bf16.mxu0 0
    %388 = vmatpush1.bf16.msra.mxu0 %v368
    %389 = vmatprep.subr.bf16.mxu0 0
    %390 = vmatpush1.bf16.msra.mxu0 %v369
    %391 = vmatprep.subr.bf16.mxu0 0
    %392 = vmatpush1.bf16.msra.mxu0 %v370
    %393 = vmatprep.subr.bf16.mxu0 0
    %394 = vmatpush1.bf16.msra.mxu0 %v371
    %395 = vmatprep.subr.bf16.mxu0 0
    %396 = vmatpush1.bf16.msra.mxu0 %v372
    %397 = vmatprep.subr.bf16.mxu0 0
    %398 = vmatpush1.bf16.msra.mxu0 0
    %399 = vmatprep.subr.bf16.mxu0 0
    %400 = vmatpush1.bf16.msra.mxu0 0
    %401 = vmatprep.subr.bf16.mxu0 0
    %402 = vmatpush1.bf16.msra.mxu0 0
    %403 = vmatprep.subr.bf16.mxu0 0
    %404 = vmatpush1.bf16.msra.mxu0 0
    %405 = vmatprep.subr.bf16.mxu0 0
    %406 = vmatpush1.bf16.msra.mxu0 0
    %407 = vmatprep.subr.bf16.mxu0 0
    %408 = vmatpush1.bf16.msra.mxu0 0
    %409 = vmatprep.subr.bf16.mxu0 0
    %410 = vmatpush1.bf16.msra.mxu0 0
    %411 = vmatprep.subr.bf16.mxu0 0
    %412 = vmatpush1.bf16.msra.mxu0 0
    %413 = vmatprep.mubr.bf16.mxu0 0
    %414 = vmatmul.mubr.bf16.gmra.mrb[0].mxu0 %v309
    %v415 = vpop.f32.mrb[0].mxu0
    %v416 = vadd.f32 %v331, %v415
    %v417 = vpop.f32.mrb[0].mxu0
    %v418 = vpop.f32.mrb[0].mxu0
    %v419 = vpop.f32.mrb[0].mxu0
    %420 = vdwg.mxu0
    %421 = vst [vmem:[#allocation9] sm:$0xff] %v416
    // Predicated region
    $region46: #{tpu_custom_call.1} parent=1 // pred_check
      _
    $region47: #{tpu_custom_call.1} parent=1 // pred_check_branch
      %423 = sbr.rel (0) target = $region49
    $region48: #{tpu_custom_call.1} parent=1 // pred_region
      %s425 = ssub.s32 128, 128
      %426 = vsyncadd [#allocation5], %s425
      %s428 = sshll.u32 [#allocation9], 4
      %s429 = int_to_ptr.vmem [resolvable:$true] %s428
      %431 = dma.vmem_to_hbm [thread:$0]  %s429, 128, %s7, [#allocation5]
    $region49: #{tpu_custom_call.1} parent=1 // pred_fallthru
      _
    // Predicated region
    $region50: #{tpu_custom_call.1} parent=1 // pred_check
      _
    $region51: #{tpu_custom_call.1} parent=1 // pred_check_branch
      %433 = sbr.rel (0) target = $region53
    $region52: #{tpu_custom_call.1} parent=1 // pred_region
      %s435 = ssub.s32 128, 128
      %436 = vsyncadd [#allocation11], %s435
      %s438 = sshll.u32 [#allocation10], 4
      %s439 = int_to_ptr.vmem [resolvable:$true] %s438
      %441 = dma.vmem_to_hbm [thread:$0]  %s439, 128, %s8, [#allocation11]
    $region53: #{tpu_custom_call.1} parent=1 // pred_fallthru
      _
    // Predicated region
    $region54: #{tpu_custom_call.1} parent=1 // pred_check
      _
    $region55: #{tpu_custom_call.1} parent=1 // pred_check_branch
      %443 = sbr.rel (0) target = $region57
    $region56: #{tpu_custom_call.1} parent=1 // pred_region
      %444 = dma.done [#allocation5], 128
    $region57: #{tpu_custom_call.1} parent=1 // pred_fallthru
      _
    // Predicated region
    $region58: #{tpu_custom_call.1} parent=1 // pred_check
      _
    $region59: #{tpu_custom_call.1} parent=1 // pred_check_branch
      %446 = sbr.rel (0) target = $region61
    $region60: #{tpu_custom_call.1} parent=1 // pred_region
      %447 = dma.done [#allocation11], 128
    $region61: #{tpu_custom_call.1} parent=1 // pred_fallthru
      _
    %448 = vsyncpa [#allocation4], 1
    %449 = vsyncpa [#allocation7], 1
    %450 = vsyncpa [#allocation5], 1
    %451 = vsyncpa [#allocation11], 1

</llo_original>
